<compile_context>
chip_gen: v7x
topology: tpu7x:2x2x1
jax: 0.10.0
libtpu: 0.0.40
codegen_flags: <defaults>
</compile_context>

<pallas_src>
import math
import functools

import jax
import jax.numpy as jnp
from jax.experimental import pallas as pl
from jax.experimental.pallas import tpu as pltpu


def _make_pe(max_len: int, d_model: int, reverse: bool = False) -> jnp.ndarray:
    """Deterministic sinusoidal positional-encoding table (1, max_len, d_model), f32."""
    if reverse:
        position = jnp.arange(max_len - 1, -1, -1.0, dtype=jnp.float32)[:, None]
    else:
        position = jnp.arange(0, max_len, dtype=jnp.float32)[:, None]
    div_term = jnp.exp(
        jnp.arange(0, d_model, 2, dtype=jnp.float32) * -(math.log(10000.0) / d_model)
    )
    angles = position * div_term                       # (max_len, d_model//2)
    pe = jnp.zeros((max_len, d_model), dtype=jnp.float32)
    pe = pe.at[:, 0::2].set(jnp.sin(angles))
    pe = pe.at[:, 1::2].set(jnp.cos(angles))
    return pe[None, :, :]                              # (1, max_len, d_model)


def _pe_add_kernel(x_ref, pe_ref, o_ref, *, xscale: float):
    # x_ref:  (B, T_tile, D) tile of the input
    # pe_ref: (1, T_tile, D) f32 tile of the positional table (broadcast over batch)
    x = x_ref[...].astype(jnp.float32)
    o_ref[...] = (x * xscale + pe_ref[...]).astype(o_ref.dtype)


def _choose_time_tile(T: int, B: int, D: int, itemsize: int,
                      target_block_bytes: int = 4 * 1024 * 1024) -> int:
    """Pick T_tile: multiple of the sublane packing, ~target_block_bytes per x block.

    Prefers >= 2 grid steps (megacore sharding on v7x) when T is large enough.
    Falls back to the full time extent for tiny inputs (full-extent dims are
    always a legal block shape).
    """
    sub = 16 if itemsize == 2 else 8
    if T <= 2 * sub:
        return T                                       # tiny: one full-extent block
    row_bytes = max(1, B * D * itemsize)               # bytes per time-row of an x block
    t_budget = (target_block_bytes // row_bytes // sub) * sub
    # cap so we get at least 2 grid steps, and never below one sublane group
    t_cap = (T // 2 // sub) * sub
    t_tile = max(sub, min(t_budget, t_cap))
    return t_tile if t_tile >= sub else T


def positional_encoding(x: jnp.ndarray, pe: jnp.ndarray, d_model: int) -> jnp.ndarray:
    """Apply x * sqrt(d_model) + pe[:, :T] via a Pallas kernel.

    Args:
      x:  (B, T, D) array (f32 or bf16)
      pe: (1, max_len, D) f32 table with max_len >= T
    Returns:
      (B, T, D) array with x's dtype
    """
    B, T, D = x.shape
    assert D == d_model
    assert pe.shape[1] >= T and pe.shape[2] == D

    itemsize = jnp.dtype(x.dtype).itemsize
    pe_slice = pe[:, :T, :]                            # tiny (T*D f32), stays f32

    t_tile = _choose_time_tile(T, B, D, itemsize)
    num_tiles = pl.cdiv(T, t_tile)
    xscale = math.sqrt(d_model)

    kernel = functools.partial(_pe_add_kernel, xscale=xscale)

    # VMEM footprint with lane/sublane padding, double-buffered:
    #   x block + out block (x dtype) + pe block (f32)
    sub = 16 if itemsize == 2 else 8
    d_pad = pl.cdiv(D, 128) * 128
    t_pad = pl.cdiv(t_tile, sub) * sub
    block_elems = t_pad * d_pad
    vmem_need = 2 * (2 * B * block_elems * itemsize + block_elems * 4)

    compiler_kwargs = dict(dimension_semantics=("parallel",))
    # v5e's default scoped limit is 16 MiB; raise explicitly once we approach it.
    if vmem_need > 12 * 1024 * 1024:
        compiler_kwargs["vmem_limit_bytes"] = int(
            min(vmem_need * 1.25 + (2 << 20), 60 * 1024 * 1024)
        )

    out = pl.pallas_call(
        kernel,
        out_shape=jax.ShapeDtypeStruct((B, T, D), x.dtype),
        grid=(num_tiles,),
        in_specs=[
            pl.BlockSpec((B, t_tile, D), lambda t: (0, t, 0)),   # x: full batch, time tile
            pl.BlockSpec((1, t_tile, D), lambda t: (0, t, 0)),   # pe: one copy per time tile
        ],
        out_specs=pl.BlockSpec((B, t_tile, D), lambda t: (0, t, 0)),
        compiler_params=pltpu.CompilerParams(**compiler_kwargs),
    )(x, pe_slice)

    return out
    # TODO(synk): dropout is identity in eval mode; training-mode dropout (via
    # pltpu.prng_random_bits) is omitted to match deterministic inference semantics.


if __name__ == "__main__":
    d_model = 32
    max_len = 50
    batch, time = 2, 8

    key = jax.random.PRNGKey(0)
    x = jax.random.normal(key, (batch, time, d_model), dtype=jnp.float32)

    pe = _make_pe(max_len, d_model, reverse=False)

    out = positional_encoding(x, pe, d_model)
    out = jax.block_until_ready(out)

    # reference check (plain JAX)
    ref = x * math.sqrt(d_model) + pe[:, :time, :]
    assert out.shape == (batch, time, d_model)
    assert jnp.allclose(out, ref, atol=1e-5, rtol=1e-5)

    print("KERNEL_OK")
</pallas_src>

<mosaic_0001>
module attributes {stable_mosaic.version = 11 : i64} {
  func.func @_pe_add_kernel(%arg0: i32, %arg1: memref<2x8x32xf32, #tpu.memory_space<vmem>>, %arg2: memref<1x8x32xf32, #tpu.memory_space<vmem>>, %arg3: memref<2x8x32xf32, #tpu.memory_space<vmem>>) attributes {dimension_semantics = [#tpu.dimension_semantics<parallel>], iteration_bounds = array<i64: 1>, scalar_prefetch = 0 : i64, scratch_operands = 0 : i64, tpu.core_type = #tpu.core_type<tc>, window_params = [{transform_indices = @transform_0, window_bounds = array<i64: 2, 8, 32>}, {transform_indices = @transform_1, window_bounds = array<i64: 1, 8, 32>}, {transform_indices = @transform_2, window_bounds = array<i64: 2, 8, 32>}]} {
    %c0 = arith.constant 0 : index
    %c0_0 = arith.constant 0 : index
    %c0_1 = arith.constant 0 : index
    %0 = vector.load %arg1[%c0, %c0_0, %c0_1] : memref<2x8x32xf32, #tpu.memory_space<vmem>>, vector<2x8x32xf32>
    %cst = arith.constant 5.65685415 : f32
    %1 = vector.broadcast %cst : f32 to vector<2x8x32xf32>
    %2 = arith.mulf %0, %1 : vector<2x8x32xf32>
    %c0_2 = arith.constant 0 : index
    %c0_3 = arith.constant 0 : index
    %c0_4 = arith.constant 0 : index
    %3 = vector.load %arg2[%c0_2, %c0_3, %c0_4] : memref<1x8x32xf32, #tpu.memory_space<vmem>>, vector<1x8x32xf32>
    %4 = vector.broadcast %3 : vector<1x8x32xf32> to vector<2x8x32xf32>
    %5 = arith.addf %2, %4 : vector<2x8x32xf32>
    %c0_5 = arith.constant 0 : index
    %c0_6 = arith.constant 0 : index
    %c0_7 = arith.constant 0 : index
    %6 = vector.load %arg3[%c0_5, %c0_6, %c0_7] : memref<2x8x32xf32, #tpu.memory_space<vmem>>, vector<2x8x32xf32>
    tpu.vector_store %arg3[%c0_5, %c0_6, %c0_7], %5 {strides = array<i32>} : memref<2x8x32xf32, #tpu.memory_space<vmem>>, vector<2x8x32xf32>,
    return
  }
  func.func @transform_0(%arg0: i32) -> (i32, i32, i32) {
    %c0_i32 = arith.constant 0 : i32
    %c0_i32_0 = arith.constant 0 : i32
    %c0_i32_1 = arith.constant 0 : i32
    return %c0_i32, %arg0, %c0_i32_0 : i32, i32, i32
  }
  func.func @transform_1(%arg0: i32) -> (i32, i32, i32) {
    %c0_i32 = arith.constant 0 : i32
    %c0_i32_0 = arith.constant 0 : i32
    %c0_i32_1 = arith.constant 0 : i32
    return %c0_i32, %arg0, %c0_i32_0 : i32, i32, i32
  }
  func.func @transform_2(%arg0: i32) -> (i32, i32, i32) {
    %c0_i32 = arith.constant 0 : i32
    %c0_i32_0 = arith.constant 0 : i32
    %c0_i32_1 = arith.constant 0 : i32
    return %c0_i32, %arg0, %c0_i32_0 : i32, i32, i32
  }
}

</mosaic_0001>

<llo_original>
// kernel: tpu_custom_call.1
$region0: #{tpu_custom_call.1}
  #allocation0 [shape = 'u32[]', space=smem, size = 0x4, offset = 0x4, fixed_abs, tag = 'smem constant byte address 0x4 - core index']
  #allocation1 [shape = 'u32[144,128]{1,0:T(1,128)}', space=vmem, size = 0x12000, scoped, tag = 'internal scratch']
  %s0 = inlined_call_operand.hbm [shape: f32[2,8,32], index: 0, kind: input, shape index: {}]
  %s1 = inlined_call_operand.hbm [shape: f32[1,8,32], index: 1, kind: input, shape index: {}]
  %s2 = inlined_call_operand.hbm [shape: f32[2,8,32], index: 2, kind: output, shape index: {}]
  %s3 = sld [smem:[#allocation0]]
  $region26: #{tpu_custom_call.1} parent=0
    _
  %s5 = ssub.s32 1, %s3
  %s6 = scalar_select 0, %s5, %s3
  $region1: #{tpu_custom_call.1} parent=0
    #allocation2 [shape = 'u8[8192]{0}', space=vmem, size = 0x2000, scoped, tag = 'input window, operand 0, single buffered']
    #allocation3 [shape = 's32[1]{0}', space=sflag, size = 0x4, scoped, tag = 'scoped memory for tpu_custom_call.1']
    #allocation4 [shape = 's32[1]{0}', space=sflag, size = 0x4, scoped, tag = 'scoped memory for tpu_custom_call.1']
    #allocation5 [shape = 'u8[4096]{0}', space=vmem, size = 0x1000, scoped, tag = 'input window, operand 1, single buffered']
    #allocation6 [shape = 's32[1]{0}', space=sflag, size = 0x4, scoped, tag = 'scoped memory for tpu_custom_call.1']
    #allocation7 [shape = 'u8[8192]{0}', space=vmem, size = 0x2000, scoped, tag = 'output window, operand 0, single buffered']
    %7 = vsyncpa [#allocation3], 0
    %8 = vsyncpa [#allocation6], 0
    %9 = vsyncpa [#allocation4], 0
    // Predicated region
    $region2: #{tpu_custom_call.1} parent=1 // pred_check
      _
    $region3: #{tpu_custom_call.1} parent=1 // pred_check_branch
      %11 = sbr.rel (0) target = $region5
    $region4: #{tpu_custom_call.1} parent=1 // pred_region
      %s13 = ssub.s32 256, 256
      %14 = vsyncadd [#allocation3], %s13
      %s15 = sshll.u32 [#allocation2], 4
      %s16 = int_to_ptr.vmem [resolvable:$true] %s15
      %21 = dma.hbm_to_vmem [thread:$0]  %s0, 256, %s16, [#allocation3], 128, 128, 8
    $region5: #{tpu_custom_call.1} parent=1 // pred_fallthru
      _
    // Predicated region
    $region6: #{tpu_custom_call.1} parent=1 // pred_check
      _
    $region7: #{tpu_custom_call.1} parent=1 // pred_check_branch
      %23 = sbr.rel (0) target = $region9
    $region8: #{tpu_custom_call.1} parent=1 // pred_region
      %s25 = ssub.s32 128, 128
      %26 = vsyncadd [#allocation6], %s25
      %s28 = sshll.u32 [#allocation5], 4
      %s29 = int_to_ptr.vmem [resolvable:$true] %s28
      %31 = dma.hbm_to_vmem [thread:$0]  %s1, 128, %s29, [#allocation6]
    $region9: #{tpu_custom_call.1} parent=1 // pred_fallthru
      _
    // Predicated region
    $region10: #{tpu_custom_call.1} parent=1 // pred_check
      _
    $region11: #{tpu_custom_call.1} parent=1 // pred_check_branch
      %33 = sbr.rel (0) target = $region13
    $region12: #{tpu_custom_call.1} parent=1 // pred_region
      %34 = dma.done [#allocation3], 256
    $region13: #{tpu_custom_call.1} parent=1 // pred_fallthru
      _
    // Predicated region
    $region14: #{tpu_custom_call.1} parent=1 // pred_check
      _
    $region15: #{tpu_custom_call.1} parent=1 // pred_check_branch
      %36 = sbr.rel (0) target = $region17
    $region16: #{tpu_custom_call.1} parent=1 // pred_region
      %37 = dma.done [#allocation6], 128
    $region17: #{tpu_custom_call.1} parent=1 // pred_fallthru
      _
    %v38 = vld [vmem:[#allocation2] sm:$0xff]
    %v39 = vld [vmem:[#allocation2 + $0x8] sm:$0xff]
    %v40 = vmul.f32 %v38, 5.656854
    %v41 = vmul.f32 %v39, 5.656854
    %v42 = vld [vmem:[#allocation5] sm:$0xff]
    %v43 = vadd.f32 %v40, %v42
    %v44 = vadd.f32 %v41, %v42
    %vm45 = vcmask 261120
    %46 = vst.msk [vmem:[#allocation7] sm:$0xff] %vm45, %v43
    %47 = vst.msk [vmem:[#allocation7 + $0x8] sm:$0xff] %vm45, %v44
    // Predicated region
    $region18: #{tpu_custom_call.1} parent=1 // pred_check
      _
    $region19: #{tpu_custom_call.1} parent=1 // pred_check_branch
      %49 = sbr.rel (0) target = $region21
    $region20: #{tpu_custom_call.1} parent=1 // pred_region
      %s51 = ssub.s32 256, 256
      %52 = vsyncadd [#allocation4], %s51
      %s53 = sshll.u32 [#allocation7], 4
      %s54 = int_to_ptr.vmem [resolvable:$true] %s53
      %59 = dma.vmem_to_hbm [thread:$0]  %s54, 256, %s2, [#allocation4], 128, 128, 8
    $region21: #{tpu_custom_call.1} parent=1 // pred_fallthru
      _
    // Predicated region
    $region22: #{tpu_custom_call.1} parent=1 // pred_check
      _
    $region23: #{tpu_custom_call.1} parent=1 // pred_check_branch
      %61 = sbr.rel (0) target = $region25
    $region24: #{tpu_custom_call.1} parent=1 // pred_region
      %62 = dma.done [#allocation4], 256
    $region25: #{tpu_custom_call.1} parent=1 // pred_fallthru
      _
    %63 = vsyncpa [#allocation3], 1
    %64 = vsyncpa [#allocation6], 1
    %65 = vsyncpa [#allocation4], 1

</llo_original>
